<compile_context>
chip_gen: v5e
topology: v5e:2x2
jax: 0.10.0
libtpu: 0.0.40
codegen_flags: <defaults>
</compile_context>

<pallas_src>
from functools import partial

import jax
import jax.numpy as jnp
from jax.experimental import pallas as pl
from jax.experimental.pallas import tpu as pltpu

NEG_SLOPE = 0.01  # nn.LeakyReLU default
DROP = 0.2        # TODO(synk): dropout is eval-mode identity (training-mode
                  #             stochastic dropout cannot match torch RNG anyway).

LANE = 128
ROW_ALIGN = 16    # bf16 native sublane packing is (16, 128)


def _round_up(x, m):
    return ((x + m - 1) // m) * m


def _leaky_relu(x):
    return jnp.where(x > 0, x, NEG_SLOPE * x)


def _pick_tb(B):
    """Batch tile: multiple of 16, <=128 rows, minimal padding waste, and >=2
    grid steps whenever that stays 16-aligned (so dimension_semantics=
    ("parallel",) can shard across v7x's two TensorCores)."""
    b16 = _round_up(B, ROW_ALIGN)
    if b16 <= 128:
        # Split small batches into two tiles when 16-alignment allows it.
        return b16 // 2 if (b16 % (2 * ROW_ALIGN) == 0) else b16
    # Large batches: 128-row tiles (full MXU M dim, low vreg pressure on v5e,
    # least padding waste among {128, 256}, and always >=2 grid steps).
    return 128


# --------------------------------------------------------------------------- #
# Kernel
# --------------------------------------------------------------------------- #
def lvae_decoder_kernel(z_ref, w1_ref, b1_ref, w2_ref, b2_ref, w3_ref, b3_ref,
                        out_ref):
    """Fused 3-layer MLP decoder for one (TB, *) batch tile.

    z arrives f32 and is cast to bf16 in-kernel; weights are bf16 (MXU
    inputs); accumulation, bias add and LeakyReLU are f32 on the VPU.
    """
    x = z_ref[...].astype(jnp.bfloat16)            # in-kernel VPU cast
    # Layer 1
    h = jnp.dot(x, w1_ref[...],
                preferred_element_type=jnp.float32) + b1_ref[...]
    h = _leaky_relu(h)
    # Dropout(p=0.2) -> identity in eval mode.
    # Layer 2
    h = jnp.dot(h.astype(jnp.bfloat16), w2_ref[...],
                preferred_element_type=jnp.float32) + b2_ref[...]
    h = _leaky_relu(h)
    # Layer 3 (no activation)
    out_ref[...] = (jnp.dot(h.astype(jnp.bfloat16), w3_ref[...],
                            preferred_element_type=jnp.float32)
                    + b3_ref[...]).astype(out_ref.dtype)


# --------------------------------------------------------------------------- #
# One-time parameter packing (hoisted out of the per-call path)
# --------------------------------------------------------------------------- #
def pack_decoder_params(w1, b1, w2, b2, w3, b3):
    """Pad feature dims to multiples of 128 lanes and cast weights to bf16
    ONCE. Cache and reuse the returned tuple across decoder calls."""
    latent, h0 = w1.shape
    _, h1 = w2.shape
    _, out_dim = w3.shape
    lat_p, h0_p, h1_p, out_p = (_round_up(d, LANE)
                                for d in (latent, h0, h1, out_dim))

    def pad_w(w, rp, cp):
        r, c = w.shape
        return jnp.pad(w, ((0, rp - r), (0, cp - c))).astype(jnp.bfloat16)

    def pad_b(b, cp):
        b = jnp.reshape(b, (1, -1)).astype(jnp.float32)
        return jnp.pad(b, ((0, 0), (0, cp - b.shape[1])))

    packed = (pad_w(w1, lat_p, h0_p), pad_b(b1, h0_p),
              pad_w(w2, h0_p, h1_p), pad_b(b2, h1_p),
              pad_w(w3, h1_p, out_p), pad_b(b3, out_p))
    packed = tuple(jax.device_put(a) for a in packed)   # materialize once
    return packed, int(out_dim)


# --------------------------------------------------------------------------- #
# Decoder call (packed weights in, f32 reconstruction out)
# --------------------------------------------------------------------------- #
@partial(jax.jit, static_argnames=("out_dim", "single_buffer_weights"))
def _decode_packed(z, w1p, b1p, w2p, b2p, w3p, b3p, *, out_dim,
                   single_buffer_weights):
    B, latent = z.shape
    lat_p, h0_p = w1p.shape
    _, h1_p = w2p.shape
    _, out_p = w3p.shape

    TB = _pick_tb(B)
    B_p = _round_up(B, TB)
    grid = (B_p // TB,)

    # Pad z only (stays f32; bf16 cast happens inside the kernel). Exact.
    zp = jnp.pad(z, ((0, B_p - B), (0, lat_p - latent)))

    # Weights/biases: constant index map -> DMA'd once, VMEM-resident across
    # all grid steps; single-buffered to halve their VMEM footprint.
    def resident(shape):
        if single_buffer_weights:
            return pl.BlockSpec(shape, lambda i: (0, 0),
                                pipeline_mode=pl.Buffered(1))
        return pl.BlockSpec(shape, lambda i: (0, 0))

    # Explicit VMEM budget (weights x1 buffer, z/out double-buffered, live
    # f32 activations), ~25% headroom but capped below v7x's 64 MiB physical.
    wbuf = 1 if single_buffer_weights else 2
    vmem_need = (
        wbuf * 2 * (lat_p * h0_p + h0_p * h1_p + h1_p * out_p)   # bf16 weights
        + wbuf * 4 * (h0_p + h1_p + out_p)                       # f32 biases
        + 2 * 4 * TB * (lat_p + out_p)                           # z/out, 2 bufs
        + 4 * TB * (h0_p + h1_p)                                 # f32 activations
    )
    vmem_limit = int(min(max(2 * vmem_need, 32 << 20), 48 << 20))

    flops = 2 * B_p * (lat_p * h0_p + h0_p * h1_p + h1_p * out_p)
    bytes_accessed = (
        4 * zp.size                                              # f32 z read
        + 2 * (w1p.size + w2p.size + w3p.size)                   # bf16 weights
        + 4 * (b1p.size + b2p.size + b3p.size)                   # f32 biases
        + 4 * B_p * out_p                                        # f32 output
    )

    out_padded = pl.pallas_call(
        lvae_decoder_kernel,
        out_shape=jax.ShapeDtypeStruct((B_p, out_p), jnp.float32),
        grid=grid,
        in_specs=[
            pl.BlockSpec((TB, lat_p), lambda i: (i, 0)),   # z: tiled over batch
            resident((lat_p, h0_p)), resident((1, h0_p)),
            resident((h0_p, h1_p)), resident((1, h1_p)),
            resident((h1_p, out_p)), resident((1, out_p)),
        ],
        out_specs=pl.BlockSpec((TB, out_p), lambda i: (i, 0)),
        compiler_params=pltpu.CompilerParams(
            dimension_semantics=("parallel",),
            vmem_limit_bytes=vmem_limit),
        cost_estimate=pl.CostEstimate(
            flops=flops, transcendentals=0, bytes_accessed=bytes_accessed),
    )(zp, w1p, b1p, w2p, b2p, w3p, b3p)

    # Slice the lane/batch padding back off (padded lanes hold bias values —
    # never reuse out_padded without this slice).
    return out_padded[:B, :out_dim]


_SINGLE_BUFFER_OK = [True]   # flip to False once if Buffered(1) is unsupported


def lvae_decoder(z, packed_params):
    """z: [B, latent] f32; packed_params from pack_decoder_params()."""
    packed, out_dim = packed_params
    if _SINGLE_BUFFER_OK[0]:
        try:
            return _decode_packed(z, *packed, out_dim=out_dim,
                                  single_buffer_weights=True)
        except Exception:
            # pipeline_mode=pl.Buffered(1) not supported on this JAX/Mosaic;
            # fall back to default double-buffered weights (correct, more VMEM).
            _SINGLE_BUFFER_OK[0] = False
    return _decode_packed(z, *packed, out_dim=out_dim,
                          single_buffer_weights=False)


def init_linear(key, fan_in, fan_out):
    """Deterministic init mimicking torch.nn.Linear (uniform +/- 1/sqrt(fan_in))."""
    kw, kb = jax.random.split(key)
    bound = 1.0 / jnp.sqrt(float(fan_in))
    # stored as [in, out] so the kernel does x @ W
    w = jax.random.uniform(kw, (fan_in, fan_out), jnp.float32, -bound, bound)
    b = jax.random.uniform(kb, (fan_out,), jnp.float32, -bound, bound)
    return w, b


if __name__ == "__main__":
    # Small, module-consistent shapes.
    batch = 8
    input_dim = 48           # decoder output (reconstruction) dim
    latent_dim = 16
    hidden_sizes = [64, 32]  # module reverses this -> hid = [32, 64]
    hid = hidden_sizes[::-1]

    key = jax.random.PRNGKey(0)
    k_z, k1, k2, k3 = jax.random.split(key, 4)

    z = jax.random.normal(k_z, (batch, latent_dim), jnp.float32)

    w1, b1 = init_linear(k1, latent_dim, hid[0])   # Linear(latent_dim, 32)
    w2, b2 = init_linear(k2, hid[0], hid[1])       # Linear(32, 64)
    w3, b3 = init_linear(k3, hid[1], input_dim)    # Linear(64, input_dim)

    # Pack (pad + bf16-cast) the weights ONCE; reuse across calls.
    packed = pack_decoder_params(w1, b1, w2, b2, w3, b3)

    out = lvae_decoder(z, packed)
    out = jax.block_until_ready(out)
    assert out.shape == (batch, input_dim)

    # Pure-JAX reference (eval-mode dropout = identity), with inputs quantized
    # to bf16 exactly like the kernel's MXU inputs (accumulation stays f32).
    def q(x):
        return x.astype(jnp.bfloat16).astype(jnp.float32)

    def ref(z):
        h = q(z) @ q(w1) + b1
        h = jnp.where(h > 0, h, NEG_SLOPE * h)
        h = q(h) @ q(w2) + b2
        h = jnp.where(h > 0, h, NEG_SLOPE * h)
        return q(h) @ q(w3) + b3

    ref_out = ref(z)
    assert jnp.allclose(out, ref_out, atol=2e-3, rtol=2e-3), (
        float(jnp.max(jnp.abs(out - ref_out))))

    print("KERNEL_OK")
</pallas_src>

<mosaic_0001>
module attributes {stable_mosaic.version = 11 : i64} {
  func.func @lvae_decoder_kernel(%arg0: i32, %arg1: memref<16x128xf32, #tpu.memory_space<vmem>>, %arg2: memref<128x128xbf16, #tpu.memory_space<vmem>>, %arg3: memref<1x128xf32, #tpu.memory_space<vmem>>, %arg4: memref<128x128xbf16, #tpu.memory_space<vmem>>, %arg5: memref<1x128xf32, #tpu.memory_space<vmem>>, %arg6: memref<128x128xbf16, #tpu.memory_space<vmem>>, %arg7: memref<1x128xf32, #tpu.memory_space<vmem>>, %arg8: memref<16x128xf32, #tpu.memory_space<vmem>>) attributes {dimension_semantics = [#tpu.dimension_semantics<parallel>], iteration_bounds = array<i64: 1>, scalar_prefetch = 0 : i64, scratch_operands = 0 : i64, tpu.core_type = #tpu.core_type<tc>, window_params = [{transform_indices = @transform_0, window_bounds = array<i64: 16, 128>}, {pipeline_mode = #tpu.pipeline_mode<synchronous>, transform_indices = @transform_1, window_bounds = array<i64: 128, 128>}, {pipeline_mode = #tpu.pipeline_mode<synchronous>, transform_indices = @transform_2, window_bounds = array<i64: 1, 128>}, {pipeline_mode = #tpu.pipeline_mode<synchronous>, transform_indices = @transform_3, window_bounds = array<i64: 128, 128>}, {pipeline_mode = #tpu.pipeline_mode<synchronous>, transform_indices = @transform_4, window_bounds = array<i64: 1, 128>}, {pipeline_mode = #tpu.pipeline_mode<synchronous>, transform_indices = @transform_5, window_bounds = array<i64: 128, 128>}, {pipeline_mode = #tpu.pipeline_mode<synchronous>, transform_indices = @transform_6, window_bounds = array<i64: 1, 128>}, {transform_indices = @transform_7, window_bounds = array<i64: 16, 128>}]} {
    %c0 = arith.constant 0 : index
    %c0_0 = arith.constant 0 : index
    %0 = vector.load %arg1[%c0, %c0_0] : memref<16x128xf32, #tpu.memory_space<vmem>>, vector<16x128xf32>
    %1 = arith.truncf %0 : vector<16x128xf32> to vector<16x128xbf16>
    %c0_1 = arith.constant 0 : index
    %c0_2 = arith.constant 0 : index
    %2 = vector.load %arg2[%c0_1, %c0_2] : memref<128x128xbf16, #tpu.memory_space<vmem>>, vector<128x128xbf16>
    %cst = arith.constant dense<0.000000e+00> : vector<16x128xf32>
    %3 = tpu.matmul %1, %2, %cst {dimension_numbers = #tpu.dot_dimension_numbers<[1], [0], [0], [1], [0, 0, 1, 1], [], []>} : vector<16x128xbf16>, vector<128x128xbf16>, vector<16x128xf32> -> vector<16x128xf32>
    %c0_3 = arith.constant 0 : index
    %c0_4 = arith.constant 0 : index
    %4 = vector.load %arg3[%c0_3, %c0_4] : memref<1x128xf32, #tpu.memory_space<vmem>>, vector<1x128xf32>
    %5 = vector.broadcast %4 : vector<1x128xf32> to vector<16x128xf32>
    %6 = arith.addf %3, %5 : vector<16x128xf32>
    %cst_5 = arith.constant 0.000000e+00 : f32
    %7 = vector.broadcast %cst_5 : f32 to vector<16x128xf32>
    %8 = arith.cmpf ogt, %6, %7 : vector<16x128xf32>
    %cst_6 = arith.constant 0.00999999977 : f32
    %9 = vector.broadcast %cst_6 : f32 to vector<16x128xf32>
    %10 = arith.mulf %9, %6 : vector<16x128xf32>
    %11 = arith.select %8, %6, %10 : vector<16x128xi1>, vector<16x128xf32>
    %12 = arith.truncf %11 : vector<16x128xf32> to vector<16x128xbf16>
    %c0_7 = arith.constant 0 : index
    %c0_8 = arith.constant 0 : index
    %13 = vector.load %arg4[%c0_7, %c0_8] : memref<128x128xbf16, #tpu.memory_space<vmem>>, vector<128x128xbf16>
    %cst_9 = arith.constant dense<0.000000e+00> : vector<16x128xf32>
    %14 = tpu.matmul %12, %13, %cst_9 {dimension_numbers = #tpu.dot_dimension_numbers<[1], [0], [0], [1], [0, 0, 1, 1], [], []>} : vector<16x128xbf16>, vector<128x128xbf16>, vector<16x128xf32> -> vector<16x128xf32>
    %c0_10 = arith.constant 0 : index
    %c0_11 = arith.constant 0 : index
    %15 = vector.load %arg5[%c0_10, %c0_11] : memref<1x128xf32, #tpu.memory_space<vmem>>, vector<1x128xf32>
    %16 = vector.broadcast %15 : vector<1x128xf32> to vector<16x128xf32>
    %17 = arith.addf %14, %16 : vector<16x128xf32>
    %cst_12 = arith.constant 0.000000e+00 : f32
    %18 = vector.broadcast %cst_12 : f32 to vector<16x128xf32>
    %19 = arith.cmpf ogt, %17, %18 : vector<16x128xf32>
    %cst_13 = arith.constant 0.00999999977 : f32
    %20 = vector.broadcast %cst_13 : f32 to vector<16x128xf32>
    %21 = arith.mulf %20, %17 : vector<16x128xf32>
    %22 = arith.select %19, %17, %21 : vector<16x128xi1>, vector<16x128xf32>
    %23 = arith.truncf %22 : vector<16x128xf32> to vector<16x128xbf16>
    %c0_14 = arith.constant 0 : index
    %c0_15 = arith.constant 0 : index
    %24 = vector.load %arg6[%c0_14, %c0_15] : memref<128x128xbf16, #tpu.memory_space<vmem>>, vector<128x128xbf16>
    %cst_16 = arith.constant dense<0.000000e+00> : vector<16x128xf32>
    %25 = tpu.matmul %23, %24, %cst_16 {dimension_numbers = #tpu.dot_dimension_numbers<[1], [0], [0], [1], [0, 0, 1, 1], [], []>} : vector<16x128xbf16>, vector<128x128xbf16>, vector<16x128xf32> -> vector<16x128xf32>
    %c0_17 = arith.constant 0 : index
    %c0_18 = arith.constant 0 : index
    %26 = vector.load %arg7[%c0_17, %c0_18] : memref<1x128xf32, #tpu.memory_space<vmem>>, vector<1x128xf32>
    %27 = vector.broadcast %26 : vector<1x128xf32> to vector<16x128xf32>
    %28 = arith.addf %25, %27 : vector<16x128xf32>
    %c0_19 = arith.constant 0 : index
    %c0_20 = arith.constant 0 : index
    %29 = vector.load %arg8[%c0_19, %c0_20] : memref<16x128xf32, #tpu.memory_space<vmem>>, vector<16x128xf32>
    tpu.vector_store %arg8[%c0_19, %c0_20], %28 {strides = array<i32>} : memref<16x128xf32, #tpu.memory_space<vmem>>, vector<16x128xf32>,
    return
  }
  func.func @transform_0(%arg0: i32) -> (i32, i32) {
    %c0_i32 = arith.constant 0 : i32
    %c0_i32_0 = arith.constant 0 : i32
    return %arg0, %c0_i32 : i32, i32
  }
  func.func @transform_1(%arg0: i32) -> (i32, i32) {
    %c0_i32 = arith.constant 0 : i32
    %c0_i32_0 = arith.constant 0 : i32
    %c0_i32_1 = arith.constant 0 : i32
    return %c0_i32, %c0_i32_0 : i32, i32
  }
  func.func @transform_2(%arg0: i32) -> (i32, i32) {
    %c0_i32 = arith.constant 0 : i32
    %c0_i32_0 = arith.constant 0 : i32
    %c0_i32_1 = arith.constant 0 : i32
    return %c0_i32, %c0_i32_0 : i32, i32
  }
  func.func @transform_3(%arg0: i32) -> (i32, i32) {
    %c0_i32 = arith.constant 0 : i32
    %c0_i32_0 = arith.constant 0 : i32
    %c0_i32_1 = arith.constant 0 : i32
    return %c0_i32, %c0_i32_0 : i32, i32
  }
  func.func @transform_4(%arg0: i32) -> (i32, i32) {
    %c0_i32 = arith.constant 0 : i32
    %c0_i32_0 = arith.constant 0 : i32
    %c0_i32_1 = arith.constant 0 : i32
    return %c0_i32, %c0_i32_0 : i32, i32
  }
  func.func @transform_5(%arg0: i32) -> (i32, i32) {
    %c0_i32 = arith.constant 0 : i32
    %c0_i32_0 = arith.constant 0 : i32
    %c0_i32_1 = arith.constant 0 : i32
    return %c0_i32, %c0_i32_0 : i32, i32
  }
  func.func @transform_6(%arg0: i32) -> (i32, i32) {
    %c0_i32 = arith.constant 0 : i32
    %c0_i32_0 = arith.constant 0 : i32
    %c0_i32_1 = arith.constant 0 : i32
    return %c0_i32, %c0_i32_0 : i32, i32
  }
  func.func @transform_7(%arg0: i32) -> (i32, i32) {
    %c0_i32 = arith.constant 0 : i32
    %c0_i32_0 = arith.constant 0 : i32
    return %arg0, %c0_i32 : i32, i32
  }
}

module attributes {stable_mosaic.version = 11 : i64} {
  func.func @lvae_decoder_kernel(%arg0: i32, %arg1: memref<16x128xf32, #tpu.memory_space<vmem>>, %arg2: memref<128x128xbf16, #tpu.memory_space<vmem>>, %arg3: memref<1x128xf32, #tpu.memory_space<vmem>>, %arg4: memref<128x128xbf16, #tpu.memory_space<vmem>>, %arg5: memref<1x128xf32, #tpu.memory_space<vmem>>, %arg6: memref<128x128xbf16, #tpu.memory_space<vmem>>, %arg7: memref<1x128xf32, #tpu.memory_space<vmem>>, %arg8: memref<16x128xf32, #tpu.memory_space<vmem>>) attributes {dimension_semantics = [#tpu.dimension_semantics<parallel>], iteration_bounds = array<i64: 1>, scalar_prefetch = 0 : i64, scratch_operands = 0 : i64, tpu.core_type = #tpu.core_type<tc>, window_params = [{transform_indices = @transform_0, window_bounds = array<i64: 16, 128>}, {pipeline_mode = #tpu.pipeline_mode<synchronous>, transform_indices = @transform_1, window_bounds = array<i64: 128, 128>}, {pipeline_mode = #tpu.pipeline_mode<synchronous>, transform_indices = @transform_2, window_bounds = array<i64: 1, 128>}, {pipeline_mode = #tpu.pipeline_mode<synchronous>, transform_indices = @transform_3, window_bounds = array<i64: 128, 128>}, {pipeline_mode = #tpu.pipeline_mode<synchronous>, transform_indices = @transform_4, window_bounds = array<i64: 1, 128>}, {pipeline_mode = #tpu.pipeline_mode<synchronous>, transform_indices = @transform_5, window_bounds = array<i64: 128, 128>}, {pipeline_mode = #tpu.pipeline_mode<synchronous>, transform_indices = @transform_6, window_bounds = array<i64: 1, 128>}, {transform_indices = @transform_7, window_bounds = array<i64: 16, 128>}]} {
    %c0 = arith.constant 0 : index
    %c0_0 = arith.constant 0 : index
    %0 = vector.load %arg1[%c0, %c0_0] : memref<16x128xf32, #tpu.memory_space<vmem>>, vector<16x128xf32>
    %1 = arith.truncf %0 : vector<16x128xf32> to vector<16x128xbf16>
    %c0_1 = arith.constant 0 : index
    %c0_2 = arith.constant 0 : index
    %2 = vector.load %arg2[%c0_1, %c0_2] : memref<128x128xbf16, #tpu.memory_space<vmem>>, vector<128x128xbf16>
    %cst = arith.constant dense<0.000000e+00> : vector<16x128xf32>
    %3 = tpu.matmul %1, %2, %cst {dimension_numbers = #tpu.dot_dimension_numbers<[1], [0], [0], [1], [0, 0, 1, 1], [], []>} : vector<16x128xbf16>, vector<128x128xbf16>, vector<16x128xf32> -> vector<16x128xf32>
    %c0_3 = arith.constant 0 : index
    %c0_4 = arith.constant 0 : index
    %4 = vector.load %arg3[%c0_3, %c0_4] : memref<1x128xf32, #tpu.memory_space<vmem>>, vector<1x128xf32>
    %5 = vector.broadcast %4 : vector<1x128xf32> to vector<16x128xf32>
    %6 = arith.addf %3, %5 : vector<16x128xf32>
    %cst_5 = arith.constant 0.000000e+00 : f32
    %7 = vector.broadcast %cst_5 : f32 to vector<16x128xf32>
    %8 = arith.cmpf ogt, %6, %7 : vector<16x128xf32>
    %cst_6 = arith.constant 0.00999999977 : f32
    %9 = vector.broadcast %cst_6 : f32 to vector<16x128xf32>
    %10 = arith.mulf %9, %6 : vector<16x128xf32>
    %11 = arith.select %8, %6, %10 : vector<16x128xi1>, vector<16x128xf32>
    %12 = arith.truncf %11 : vector<16x128xf32> to vector<16x128xbf16>
    %c0_7 = arith.constant 0 : index
    %c0_8 = arith.constant 0 : index
    %13 = vector.load %arg4[%c0_7, %c0_8] : memref<128x128xbf16, #tpu.memory_space<vmem>>, vector<128x128xbf16>
    %cst_9 = arith.constant dense<0.000000e+00> : vector<16x128xf32>
    %14 = tpu.matmul %12, %13, %cst_9 {dimension_numbers = #tpu.dot_dimension_numbers<[1], [0], [0], [1], [0, 0, 1, 1], [], []>} : vector<16x128xbf16>, vector<128x128xbf16>, vector<16x128xf32> -> vector<16x128xf32>
    %c0_10 = arith.constant 0 : index
    %c0_11 = arith.constant 0 : index
    %15 = vector.load %arg5[%c0_10, %c0_11] : memref<1x128xf32, #tpu.memory_space<vmem>>, vector<1x128xf32>
    %16 = vector.broadcast %15 : vector<1x128xf32> to vector<16x128xf32>
    %17 = arith.addf %14, %16 : vector<16x128xf32>
    %cst_12 = arith.constant 0.000000e+00 : f32
    %18 = vector.broadcast %cst_12 : f32 to vector<16x128xf32>
    %19 = arith.cmpf ogt, %17, %18 : vector<16x128xf32>
    %cst_13 = arith.constant 0.00999999977 : f32
    %20 = vector.broadcast %cst_13 : f32 to vector<16x128xf32>
    %21 = arith.mulf %20, %17 : vector<16x128xf32>
    %22 = arith.select %19, %17, %21 : vector<16x128xi1>, vector<16x128xf32>
    %23 = arith.truncf %22 : vector<16x128xf32> to vector<16x128xbf16>
    %c0_14 = arith.constant 0 : index
    %c0_15 = arith.constant 0 : index
    %24 = vector.load %arg6[%c0_14, %c0_15] : memref<128x128xbf16, #tpu.memory_space<vmem>>, vector<128x128xbf16>
    %cst_16 = arith.constant dense<0.000000e+00> : vector<16x128xf32>
    %25 = tpu.matmul %23, %24, %cst_16 {dimension_numbers = #tpu.dot_dimension_numbers<[1], [0], [0], [1], [0, 0, 1, 1], [], []>} : vector<16x128xbf16>, vector<128x128xbf16>, vector<16x128xf32> -> vector<16x128xf32>
    %c0_17 = arith.constant 0 : index
    %c0_18 = arith.constant 0 : index
    %26 = vector.load %arg7[%c0_17, %c0_18] : memref<1x128xf32, #tpu.memory_space<vmem>>, vector<1x128xf32>
    %27 = vector.broadcast %26 : vector<1x128xf32> to vector<16x128xf32>
    %28 = arith.addf %25, %27 : vector<16x128xf32>
    %c0_19 = arith.constant 0 : index
    %c0_20 = arith.constant 0 : index
    %29 = vector.load %arg8[%c0_19, %c0_20] : memref<16x128xf32, #tpu.memory_space<vmem>>, vector<16x128xf32>
    tpu.vector_store %arg8[%c0_19, %c0_20], %28 {strides = array<i32>} : memref<16x128xf32, #tpu.memory_space<vmem>>, vector<16x128xf32>,
    return
  }
  func.func @transform_0(%arg0: i32) -> (i32, i32) {
    %c0_i32 = arith.constant 0 : i32
    %c0_i32_0 = arith.constant 0 : i32
    return %arg0, %c0_i32 : i32, i32
  }
  func.func @transform_1(%arg0: i32) -> (i32, i32) {
    %c0_i32 = arith.constant 0 : i32
    %c0_i32_0 = arith.constant 0 : i32
    %c0_i32_1 = arith.constant 0 : i32
    return %c0_i32, %c0_i32_0 : i32, i32
  }
  func.func @transform_2(%arg0: i32) -> (i32, i32) {
    %c0_i32 = arith.constant 0 : i32
    %c0_i32_0 = arith.constant 0 : i32
    %c0_i32_1 = arith.constant 0 : i32
    return %c0_i32, %c0_i32_0 : i32, i32
  }
  func.func @transform_3(%arg0: i32) -> (i32, i32) {
    %c0_i32 = arith.constant 0 : i32
    %c0_i32_0 = arith.constant 0 : i32
    %c0_i32_1 = arith.constant 0 : i32
    return %c0_i32, %c0_i32_0 : i32, i32
  }
  func.func @transform_4(%arg0: i32) -> (i32, i32) {
    %c0_i32 = arith.constant 0 : i32
    %c0_i32_0 = arith.constant 0 : i32
    %c0_i32_1 = arith.constant 0 : i32
    return %c0_i32, %c0_i32_0 : i32, i32
  }
  func.func @transform_5(%arg0: i32) -> (i32, i32) {
    %c0_i32 = arith.constant 0 : i32
    %c0_i32_0 = arith.constant 0 : i32
    %c0_i32_1 = arith.constant 0 : i32
    return %c0_i32, %c0_i32_0 : i32, i32
  }
  func.func @transform_6(%arg0: i32) -> (i32, i32) {
    %c0_i32 = arith.constant 0 : i32
    %c0_i32_0 = arith.constant 0 : i32
    %c0_i32_1 = arith.constant 0 : i32
    return %c0_i32, %c0_i32_0 : i32, i32
  }
  func.func @transform_7(%arg0: i32) -> (i32, i32) {
    %c0_i32 = arith.constant 0 : i32
    %c0_i32_0 = arith.constant 0 : i32
    return %arg0, %c0_i32 : i32, i32
  }
}

</mosaic_0001>

<llo_original>
// kernel: _decode_packed.1
$region0: #{_decode_packed.1}
  #allocation0 [shape = 'u32[]', space=smem, size = 0x4, offset = 0x4, fixed_abs, tag = 'smem constant byte address 0x4 - core index']
  #allocation1 [shape = 'u32[72,128]{1,0:T(1,128)}', space=vmem, size = 0x9000, scoped, tag = 'internal scratch']
  %s0 = inlined_call_operand.vmem [shape: f32[16,128], index: 0, kind: input, shape index: {}]
  %s1 = inlined_call_operand.hbm [shape: bf16[128,128], index: 1, kind: input, shape index: {}]
  %s2 = inlined_call_operand.vmem [shape: f32[1,128], index: 2, kind: input, shape index: {}]
  %s3 = inlined_call_operand.hbm [shape: bf16[128,128], index: 3, kind: input, shape index: {}]
  %s4 = inlined_call_operand.vmem [shape: f32[1,128], index: 4, kind: input, shape index: {}]
  %s5 = inlined_call_operand.hbm [shape: bf16[128,128], index: 5, kind: input, shape index: {}]
  %s6 = inlined_call_operand.vmem [shape: f32[1,128], index: 6, kind: input, shape index: {}]
  %s7 = inlined_call_operand.vmem [shape: f32[16,128], index: 7, kind: output, shape index: {}]
  %s8 = sld [smem:[#allocation0]]
  $region50: #{_decode_packed.1} parent=0
    _
  %s10 = ssub.s32 1, %s8
  %s11 = scalar_select 0, %s10, %s8
  $region1: #{_decode_packed.1} parent=0
    #allocation2 [shape = 'u8[32768]{0}', space=vmem, size = 0x8000, scoped, tag = 'input window, operand 1, single buffered']
    #allocation3 [shape = 's32[1]{0}', space=sflag, size = 0x4, scoped, tag = 'scoped memory for _decode_packed.1']
    #allocation4 [shape = 'u8[32768]{0}', space=vmem, size = 0x8000, scoped, tag = 'input window, operand 3, single buffered']
    #allocation5 [shape = 's32[1]{0}', space=sflag, size = 0x4, scoped, tag = 'scoped memory for _decode_packed.1']
    #allocation6 [shape = 'u8[32768]{0}', space=vmem, size = 0x8000, scoped, tag = 'input window, operand 5, single buffered']
    %12 = vsyncpa [#allocation3], 0
    %13 = vsyncpa [#allocation5], 0
    // Predicated region
    $region2: #{_decode_packed.1} parent=1 // pred_check
      _
    $region3: #{_decode_packed.1} parent=1 // pred_check_branch
      %15 = sbr.rel (0) target = $region5
    $region4: #{_decode_packed.1} parent=1 // pred_region
      _
    $region5: #{_decode_packed.1} parent=1 // pred_fallthru
      _
    // Predicated region
    $region6: #{_decode_packed.1} parent=1 // pred_check
      _
    $region7: #{_decode_packed.1} parent=1 // pred_check_branch
      %17 = sbr.rel (0) target = $region9
    $region8: #{_decode_packed.1} parent=1 // pred_region
      %19 = vsyncadd [#allocation3], 0
      %s20 = sshll.u32 %s1, 4
      %s21 = int_to_ptr.hbm [resolvable:$true] %s20
      %s22 = sshll.u32 [#allocation2], 4
      %s23 = int_to_ptr.vmem [resolvable:$true] %s22
      %28 = dma.hbm_to_vmem [thread:$0]  %s21, 1024, %s23, [#allocation3], 64, 64, 4
    $region9: #{_decode_packed.1} parent=1 // pred_fallthru
      _
    // Predicated region
    $region10: #{_decode_packed.1} parent=1 // pred_check
      _
    $region11: #{_decode_packed.1} parent=1 // pred_check_branch
      %30 = sbr.rel (0) target = $region13
    $region12: #{_decode_packed.1} parent=1 // pred_region
      _
    $region13: #{_decode_packed.1} parent=1 // pred_fallthru
      _
    // Predicated region
    $region14: #{_decode_packed.1} parent=1 // pred_check
      _
    $region15: #{_decode_packed.1} parent=1 // pred_check_branch
      %32 = sbr.rel (0) target = $region17
    $region16: #{_decode_packed.1} parent=1 // pred_region
      %34 = vsyncadd [#allocation5], 0
      %s35 = sshll.u32 %s3, 4
      %s36 = int_to_ptr.hbm [resolvable:$true] %s35
      %s37 = sshll.u32 [#allocation4], 4
      %s38 = int_to_ptr.vmem [resolvable:$true] %s37
      %43 = dma.hbm_to_vmem [thread:$0]  %s36, 1024, %s38, [#allocation5], 64, 64, 4
    $region17: #{_decode_packed.1} parent=1 // pred_fallthru
      _
    // Predicated region
    $region18: #{_decode_packed.1} parent=1 // pred_check
      _
    $region19: #{_decode_packed.1} parent=1 // pred_check_branch
      %45 = sbr.rel (0) target = $region21
    $region20: #{_decode_packed.1} parent=1 // pred_region
      _
    $region21: #{_decode_packed.1} parent=1 // pred_fallthru
      _
    // Predicated region
    $region22: #{_decode_packed.1} parent=1 // pred_check
      _
    $region23: #{_decode_packed.1} parent=1 // pred_check_branch
      %47 = sbr.rel (0) target = $region25
    $region24: #{_decode_packed.1} parent=1 // pred_region
      %49 = vsyncadd [#allocation5], 0
      %s50 = sshll.u32 %s5, 4
      %s51 = int_to_ptr.hbm [resolvable:$true] %s50
      %s52 = sshll.u32 [#allocation6], 4
      %s53 = int_to_ptr.vmem [resolvable:$true] %s52
      %58 = dma.hbm_to_vmem [thread:$0]  %s51, 1024, %s53, [#allocation5], 64, 64, 4
    $region25: #{_decode_packed.1} parent=1 // pred_fallthru
      _
    // Predicated region
    $region26: #{_decode_packed.1} parent=1 // pred_check
      _
    $region27: #{_decode_packed.1} parent=1 // pred_check_branch
      %60 = sbr.rel (0) target = $region29
    $region28: #{_decode_packed.1} parent=1 // pred_region
      _
    $region29: #{_decode_packed.1} parent=1 // pred_fallthru
      _
    // Predicated region
    $region30: #{_decode_packed.1} parent=1 // pred_check
      _
    $region31: #{_decode_packed.1} parent=1 // pred_check_branch
      %62 = sbr.rel (0) target = $region33
    $region32: #{_decode_packed.1} parent=1 // pred_region
      %64 = dma.done [#allocation3], 1024
    $region33: #{_decode_packed.1} parent=1 // pred_fallthru
      _
    // Predicated region
    $region34: #{_decode_packed.1} parent=1 // pred_check
      _
    $region35: #{_decode_packed.1} parent=1 // pred_check_branch
      %66 = sbr.rel (0) target = $region37
    $region36: #{_decode_packed.1} parent=1 // pred_region
      %68 = dma.done [#allocation5], 1024
    $region37: #{_decode_packed.1} parent=1 // pred_fallthru
      _
    // Predicated region
    $region38: #{_decode_packed.1} parent=1 // pred_check
      _
    $region39: #{_decode_packed.1} parent=1 // pred_check_branch
      %70 = sbr.rel (0) target = $region41
    $region40: #{_decode_packed.1} parent=1 // pred_region
      %72 = dma.done [#allocation5], 1024
    $region41: #{_decode_packed.1} parent=1 // pred_fallthru
      _
    %v73 = vld [vmem:[%s0] sm:$0xff]
    %v74 = vld [vmem:[%s0 + $0x8] sm:$0xff]
    %v75 = vpack.c.bf16 %v74, %v73
    %v76 = vld [vmem:[#allocation2] sm:$0xf]
    %v77 = vld [vmem:[#allocation2 + $0x4] sm:$0xf]
    %v78 = vld [vmem:[#allocation2 + $0x8] sm:$0xf]
    %v79 = vld [vmem:[#allocation2 + $0xc] sm:$0xf]
    %v80 = vld [vmem:[#allocation2 + $0x10] sm:$0xf]
    %v81 = vld [vmem:[#allocation2 + $0x14] sm:$0xf]
    %v82 = vld [vmem:[#allocation2 + $0x18] sm:$0xf]
    %v83 = vld [vmem:[#allocation2 + $0x1c] sm:$0xf]
    %v84 = vld [vmem:[#allocation2 + $0x20] sm:$0xf]
    %v85 = vld [vmem:[#allocation2 + $0x24] sm:$0xf]
    %v86 = vld [vmem:[#allocation2 + $0x28] sm:$0xf]
    %v87 = vld [vmem:[#allocation2 + $0x2c] sm:$0xf]
    %v88 = vld [vmem:[#allocation2 + $0x30] sm:$0xf]
    %v89 = vld [vmem:[#allocation2 + $0x34] sm:$0xf]
    %v90 = vld [vmem:[#allocation2 + $0x38] sm:$0xf]
    %v91 = vld [vmem:[#allocation2 + $0x3c] sm:$0xf]
    %v92 = vld [vmem:[%s2] sm:$0x1]
    %v94 = vperm.slane %v92, 0
    %v112 = vunpack.c.l.b16 %v76
    %v113 = vunpack.c.l.b16 %v77
    %v114 = vunpack.c.l.b16 %v78
    %v115 = vunpack.c.l.b16 %v79
    %v116 = vunpack.c.l.b16 %v80
    %v117 = vunpack.c.l.b16 %v81
    %v118 = vunpack.c.l.b16 %v82
    %v119 = vunpack.c.l.b16 %v83
    %v120 = vunpack.c.l.b16 %v84
    %v121 = vunpack.c.l.b16 %v85
    %v122 = vunpack.c.l.b16 %v86
    %v123 = vunpack.c.l.b16 %v87
    %v124 = vunpack.c.l.b16 %v88
    %v125 = vunpack.c.l.b16 %v89
    %v126 = vunpack.c.l.b16 %v90
    %v127 = vunpack.c.l.b16 %v91
    %v128 = vpack.c.b16 %v113, %v112
    %v129 = vpack.c.b16 %v115, %v114
    %v130 = vpack.c.b16 %v117, %v116
    %v131 = vpack.c.b16 %v119, %v118
    %v132 = vpack.c.b16 %v121, %v120
    %v133 = vpack.c.b16 %v123, %v122
    %v134 = vpack.c.b16 %v125, %v124
    %v135 = vpack.c.b16 %v127, %v126
    %144 = vmatpush.bf16.msra.mxu0 %v135
    %145 = vmatpush.bf16.msra.mxu0 %v134
    %146 = vmatpush.bf16.msra.mxu0 %v133
    %147 = vmatpush.bf16.msra.mxu0 %v132
    %148 = vmatpush.bf16.msra.mxu0 %v131
    %149 = vmatpush.bf16.msra.mxu0 %v130
    %150 = vmatpush.bf16.msra.mxu0 %v129
    %151 = vmatpush.bf16.msra.mxu0 %v128
    %152 = vmatmul.bf16.gmra.mxu0 %v75
    %v153 = vpop.f32.mrf.mxu0
    %v154 = vadd.f32 %v94, %v153
    %v155 = vpop.f32.mrf.mxu0
    %v156 = vadd.f32 %v94, %v155
    %157 = vdwg.mxu0
    %vm158 = vcmp.gt.f32.partialorder %v154, 0.0
    %vm159 = vcmp.gt.f32.partialorder %v156, 0.0
    %v160 = vmul.f32 %v154, 0.01
    %v161 = vmul.f32 %v156, 0.01
    %v162 = vsel %vm158, %v154, %v160
    %v163 = vsel %vm159, %v156, %v161
    %v164 = vpack.c.bf16 %v163, %v162
    %v165 = vld [vmem:[#allocation4] sm:$0xf]
    %v166 = vld [vmem:[#allocation4 + $0x4] sm:$0xf]
    %v167 = vld [vmem:[#allocation4 + $0x8] sm:$0xf]
    %v168 = vld [vmem:[#allocation4 + $0xc] sm:$0xf]
    %v169 = vld [vmem:[#allocation4 + $0x10] sm:$0xf]
    %v170 = vld [vmem:[#allocation4 + $0x14] sm:$0xf]
    %v171 = vld [vmem:[#allocation4 + $0x18] sm:$0xf]
    %v172 = vld [vmem:[#allocation4 + $0x1c] sm:$0xf]
    %v173 = vld [vmem:[#allocation4 + $0x20] sm:$0xf]
    %v174 = vld [vmem:[#allocation4 + $0x24] sm:$0xf]
    %v175 = vld [vmem:[#allocation4 + $0x28] sm:$0xf]
    %v176 = vld [vmem:[#allocation4 + $0x2c] sm:$0xf]
    %v177 = vld [vmem:[#allocation4 + $0x30] sm:$0xf]
    %v178 = vld [vmem:[#allocation4 + $0x34] sm:$0xf]
    %v179 = vld [vmem:[#allocation4 + $0x38] sm:$0xf]
    %v180 = vld [vmem:[#allocation4 + $0x3c] sm:$0xf]
    %v181 = vld [vmem:[%s4] sm:$0x1]
    %v183 = vperm.slane %v181, 0
    %v201 = vunpack.c.l.b16 %v165
    %v202 = vunpack.c.l.b16 %v166
    %v203 = vunpack.c.l.b16 %v167
    %v204 = vunpack.c.l.b16 %v168
    %v205 = vunpack.c.l.b16 %v169
    %v206 = vunpack.c.l.b16 %v170
    %v207 = vunpack.c.l.b16 %v171
    %v208 = vunpack.c.l.b16 %v172
    %v209 = vunpack.c.l.b16 %v173
    %v210 = vunpack.c.l.b16 %v174
    %v211 = vunpack.c.l.b16 %v175
    %v212 = vunpack.c.l.b16 %v176
    %v213 = vunpack.c.l.b16 %v177
    %v214 = vunpack.c.l.b16 %v178
    %v215 = vunpack.c.l.b16 %v179
    %v216 = vunpack.c.l.b16 %v180
    %v217 = vpack.c.b16 %v202, %v201
    %v218 = vpack.c.b16 %v204, %v203
    %v219 = vpack.c.b16 %v206, %v205
    %v220 = vpack.c.b16 %v208, %v207
    %v221 = vpack.c.b16 %v210, %v209
    %v222 = vpack.c.b16 %v212, %v211
    %v223 = vpack.c.b16 %v214, %v213
    %v224 = vpack.c.b16 %v216, %v215
    %233 = vmatpush.bf16.msra.mxu0 %v224
    %234 = vmatpush.bf16.msra.mxu0 %v223
    %235 = vmatpush.bf16.msra.mxu0 %v222
    %236 = vmatpush.bf16.msra.mxu0 %v221
    %237 = vmatpush.bf16.msra.mxu0 %v220
    %238 = vmatpush.bf16.msra.mxu0 %v219
    %239 = vmatpush.bf16.msra.mxu0 %v218
    %240 = vmatpush.bf16.msra.mxu0 %v217
    %241 = vmatmul.bf16.gmra.mxu0 %v164
    %v242 = vpop.f32.mrf.mxu0
    %v243 = vadd.f32 %v183, %v242
    %v244 = vpop.f32.mrf.mxu0
    %v245 = vadd.f32 %v183, %v244
    %246 = vdwg.mxu0
    %vm247 = vcmp.gt.f32.partialorder %v243, 0.0
    %vm248 = vcmp.gt.f32.partialorder %v245, 0.0
    %v249 = vmul.f32 %v243, 0.01
    %v250 = vmul.f32 %v245, 0.01
    %v251 = vsel %vm247, %v243, %v249
    %v252 = vsel %vm248, %v245, %v250
    %v253 = vpack.c.bf16 %v252, %v251
    %v254 = vld [vmem:[#allocation6] sm:$0xf]
    %v255 = vld [vmem:[#allocation6 + $0x4] sm:$0xf]
    %v256 = vld [vmem:[#allocation6 + $0x8] sm:$0xf]
    %v257 = vld [vmem:[#allocation6 + $0xc] sm:$0xf]
    %v258 = vld [vmem:[#allocation6 + $0x10] sm:$0xf]
    %v259 = vld [vmem:[#allocation6 + $0x14] sm:$0xf]
    %v260 = vld [vmem:[#allocation6 + $0x18] sm:$0xf]
    %v261 = vld [vmem:[#allocation6 + $0x1c] sm:$0xf]
    %v262 = vld [vmem:[#allocation6 + $0x20] sm:$0xf]
    %v263 = vld [vmem:[#allocation6 + $0x24] sm:$0xf]
    %v264 = vld [vmem:[#allocation6 + $0x28] sm:$0xf]
    %v265 = vld [vmem:[#allocation6 + $0x2c] sm:$0xf]
    %v266 = vld [vmem:[#allocation6 + $0x30] sm:$0xf]
    %v267 = vld [vmem:[#allocation6 + $0x34] sm:$0xf]
    %v268 = vld [vmem:[#allocation6 + $0x38] sm:$0xf]
    %v269 = vld [vmem:[#allocation6 + $0x3c] sm:$0xf]
    %v270 = vld [vmem:[%s6] sm:$0x1]
    %v272 = vperm.slane %v270, 0
    %v290 = vunpack.c.l.b16 %v254
    %v291 = vunpack.c.l.b16 %v255
    %v292 = vunpack.c.l.b16 %v256
    %v293 = vunpack.c.l.b16 %v257
    %v294 = vunpack.c.l.b16 %v258
    %v295 = vunpack.c.l.b16 %v259
    %v296 = vunpack.c.l.b16 %v260
    %v297 = vunpack.c.l.b16 %v261
    %v298 = vunpack.c.l.b16 %v262
    %v299 = vunpack.c.l.b16 %v263
    %v300 = vunpack.c.l.b16 %v264
    %v301 = vunpack.c.l.b16 %v265
    %v302 = vunpack.c.l.b16 %v266
    %v303 = vunpack.c.l.b16 %v267
    %v304 = vunpack.c.l.b16 %v268
    %v305 = vunpack.c.l.b16 %v269
    %v306 = vpack.c.b16 %v291, %v290
    %v307 = vpack.c.b16 %v293, %v292
    %v308 = vpack.c.b16 %v295, %v294
    %v309 = vpack.c.b16 %v297, %v296
    %v310 = vpack.c.b16 %v299, %v298
    %v311 = vpack.c.b16 %v301, %v300
    %v312 = vpack.c.b16 %v303, %v302
    %v313 = vpack.c.b16 %v305, %v304
    %322 = vmatpush.bf16.msra.mxu0 %v313
    %323 = vmatpush.bf16.msra.mxu0 %v312
    %324 = vmatpush.bf16.msra.mxu0 %v311
    %325 = vmatpush.bf16.msra.mxu0 %v310
    %326 = vmatpush.bf16.msra.mxu0 %v309
    %327 = vmatpush.bf16.msra.mxu0 %v308
    %328 = vmatpush.bf16.msra.mxu0 %v307
    %329 = vmatpush.bf16.msra.mxu0 %v306
    %330 = vmatmul.bf16.gmra.mxu0 %v253
    %v331 = vpop.f32.mrf.mxu0
    %v332 = vadd.f32 %v272, %v331
    %v333 = vpop.f32.mrf.mxu0
    %v334 = vadd.f32 %v272, %v333
    %335 = vdwg.mxu0
    %336 = vst [vmem:[%s7] sm:$0xff] %v332
    %337 = vst [vmem:[%s7 + $0x8] sm:$0xff] %v334
    // Predicated region
    $region42: #{_decode_packed.1} parent=1 // pred_check
      _
    $region43: #{_decode_packed.1} parent=1 // pred_check_branch
      %339 = sbr.rel (0) target = $region45
    $region44: #{_decode_packed.1} parent=1 // pred_region
      _
    $region45: #{_decode_packed.1} parent=1 // pred_fallthru
      _
    // Predicated region
    $region46: #{_decode_packed.1} parent=1 // pred_check
      _
    $region47: #{_decode_packed.1} parent=1 // pred_check_branch
      %341 = sbr.rel (0) target = $region49
    $region48: #{_decode_packed.1} parent=1 // pred_region
      _
    $region49: #{_decode_packed.1} parent=1 // pred_fallthru
      _
    %342 = vsyncpa [#allocation3], 1
    %343 = vsyncpa [#allocation5], 1

// kernel: _decode_packed.1
$region0: #{_decode_packed.1}
  #allocation0 [shape = 'u32[]', space=smem, size = 0x4, offset = 0x4, fixed_abs, tag = 'smem constant byte address 0x4 - core index']
  #allocation1 [shape = 'u32[72,128]{1,0:T(1,128)}', space=vmem, size = 0x9000, scoped, tag = 'internal scratch']
  %s0 = inlined_call_operand.vmem [shape: f32[16,128], index: 0, kind: input, shape index: {}]
  %s1 = inlined_call_operand.hbm [shape: bf16[128,128], index: 1, kind: input, shape index: {}]
  %s2 = inlined_call_operand.vmem [shape: f32[1,128], index: 2, kind: input, shape index: {}]
  %s3 = inlined_call_operand.hbm [shape: bf16[128,128], index: 3, kind: input, shape index: {}]
  %s4 = inlined_call_operand.vmem [shape: f32[1,128], index: 4, kind: input, shape index: {}]
  %s5 = inlined_call_operand.hbm [shape: bf16[128,128], index: 5, kind: input, shape index: {}]
  %s6 = inlined_call_operand.vmem [shape: f32[1,128], index: 6, kind: input, shape index: {}]
  %s7 = inlined_call_operand.vmem [shape: f32[16,128], index: 7, kind: output, shape index: {}]
  %s8 = sld [smem:[#allocation0]]
  $region50: #{_decode_packed.1} parent=0
    _
  %s10 = ssub.s32 1, %s8
  %s11 = scalar_select 0, %s10, %s8
  $region1: #{_decode_packed.1} parent=0
    #allocation2 [shape = 'u8[32768]{0}', space=vmem, size = 0x8000, scoped, tag = 'input window, operand 1, single buffered']
    #allocation3 [shape = 's32[1]{0}', space=sflag, size = 0x4, scoped, tag = 'scoped memory for _decode_packed.1']
    #allocation4 [shape = 'u8[32768]{0}', space=vmem, size = 0x8000, scoped, tag = 'input window, operand 3, single buffered']
    #allocation5 [shape = 's32[1]{0}', space=sflag, size = 0x4, scoped, tag = 'scoped memory for _decode_packed.1']
    #allocation6 [shape = 'u8[32768]{0}', space=vmem, size = 0x8000, scoped, tag = 'input window, operand 5, single buffered']
    %12 = vsyncpa [#allocation3], 0
    %13 = vsyncpa [#allocation5], 0
    // Predicated region
    $region2: #{_decode_packed.1} parent=1 // pred_check
      _
    $region3: #{_decode_packed.1} parent=1 // pred_check_branch
      %15 = sbr.rel (0) target = $region5
    $region4: #{_decode_packed.1} parent=1 // pred_region
      _
    $region5: #{_decode_packed.1} parent=1 // pred_fallthru
      _
    // Predicated region
    $region6: #{_decode_packed.1} parent=1 // pred_check
      _
    $region7: #{_decode_packed.1} parent=1 // pred_check_branch
      %17 = sbr.rel (0) target = $region9
    $region8: #{_decode_packed.1} parent=1 // pred_region
      %19 = vsyncadd [#allocation3], 0
      %s20 = sshll.u32 %s1, 4
      %s21 = int_to_ptr.hbm [resolvable:$true] %s20
      %s22 = sshll.u32 [#allocation2], 4
      %s23 = int_to_ptr.vmem [resolvable:$true] %s22
      %28 = dma.hbm_to_vmem [thread:$0]  %s21, 1024, %s23, [#allocation3], 64, 64, 4
    $region9: #{_decode_packed.1} parent=1 // pred_fallthru
      _
    // Predicated region
    $region10: #{_decode_packed.1} parent=1 // pred_check
      _
    $region11: #{_decode_packed.1} parent=1 // pred_check_branch
      %30 = sbr.rel (0) target = $region13
    $region12: #{_decode_packed.1} parent=1 // pred_region
      _
    $region13: #{_decode_packed.1} parent=1 // pred_fallthru
      _
    // Predicated region
    $region14: #{_decode_packed.1} parent=1 // pred_check
      _
    $region15: #{_decode_packed.1} parent=1 // pred_check_branch
      %32 = sbr.rel (0) target = $region17
    $region16: #{_decode_packed.1} parent=1 // pred_region
      %34 = vsyncadd [#allocation5], 0
      %s35 = sshll.u32 %s3, 4
      %s36 = int_to_ptr.hbm [resolvable:$true] %s35
      %s37 = sshll.u32 [#allocation4], 4
      %s38 = int_to_ptr.vmem [resolvable:$true] %s37
      %43 = dma.hbm_to_vmem [thread:$0]  %s36, 1024, %s38, [#allocation5], 64, 64, 4
    $region17: #{_decode_packed.1} parent=1 // pred_fallthru
      _
    // Predicated region
    $region18: #{_decode_packed.1} parent=1 // pred_check
      _
    $region19: #{_decode_packed.1} parent=1 // pred_check_branch
      %45 = sbr.rel (0) target = $region21
    $region20: #{_decode_packed.1} parent=1 // pred_region
      _
    $region21: #{_decode_packed.1} parent=1 // pred_fallthru
      _
    // Predicated region
    $region22: #{_decode_packed.1} parent=1 // pred_check
      _
    $region23: #{_decode_packed.1} parent=1 // pred_check_branch
      %47 = sbr.rel (0) target = $region25
    $region24: #{_decode_packed.1} parent=1 // pred_region
      %49 = vsyncadd [#allocation5], 0
      %s50 = sshll.u32 %s5, 4
      %s51 = int_to_ptr.hbm [resolvable:$true] %s50
      %s52 = sshll.u32 [#allocation6], 4
      %s53 = int_to_ptr.vmem [resolvable:$true] %s52
      %58 = dma.hbm_to_vmem [thread:$0]  %s51, 1024, %s53, [#allocation5], 64, 64, 4
    $region25: #{_decode_packed.1} parent=1 // pred_fallthru
      _
    // Predicated region
    $region26: #{_decode_packed.1} parent=1 // pred_check
      _
    $region27: #{_decode_packed.1} parent=1 // pred_check_branch
      %60 = sbr.rel (0) target = $region29
    $region28: #{_decode_packed.1} parent=1 // pred_region
      _
    $region29: #{_decode_packed.1} parent=1 // pred_fallthru
      _
    // Predicated region
    $region30: #{_decode_packed.1} parent=1 // pred_check
      _
    $region31: #{_decode_packed.1} parent=1 // pred_check_branch
      %62 = sbr.rel (0) target = $region33
    $region32: #{_decode_packed.1} parent=1 // pred_region
      %64 = dma.done [#allocation3], 1024
    $region33: #{_decode_packed.1} parent=1 // pred_fallthru
      _
    // Predicated region
    $region34: #{_decode_packed.1} parent=1 // pred_check
      _
    $region35: #{_decode_packed.1} parent=1 // pred_check_branch
      %66 = sbr.rel (0) target = $region37
    $region36: #{_decode_packed.1} parent=1 // pred_region
      %68 = dma.done [#allocation5], 1024
    $region37: #{_decode_packed.1} parent=1 // pred_fallthru
      _
    // Predicated region
    $region38: #{_decode_packed.1} parent=1 // pred_check
      _
    $region39: #{_decode_packed.1} parent=1 // pred_check_branch
      %70 = sbr.rel (0) target = $region41
    $region40: #{_decode_packed.1} parent=1 // pred_region
      %72 = dma.done [#allocation5], 1024
    $region41: #{_decode_packed.1} parent=1 // pred_fallthru
      _
    %v73 = vld [vmem:[%s0] sm:$0xff]
    %v74 = vld [vmem:[%s0 + $0x8] sm:$0xff]
    %v75 = vpack.c.bf16 %v74, %v73
    %v76 = vld [vmem:[#allocation2] sm:$0xf]
    %v77 = vld [vmem:[#allocation2 + $0x4] sm:$0xf]
    %v78 = vld [vmem:[#allocation2 + $0x8] sm:$0xf]
    %v79 = vld [vmem:[#allocation2 + $0xc] sm:$0xf]
    %v80 = vld [vmem:[#allocation2 + $0x10] sm:$0xf]
    %v81 = vld [vmem:[#allocation2 + $0x14] sm:$0xf]
    %v82 = vld [vmem:[#allocation2 + $0x18] sm:$0xf]
    %v83 = vld [vmem:[#allocation2 + $0x1c] sm:$0xf]
    %v84 = vld [vmem:[#allocation2 + $0x20] sm:$0xf]
    %v85 = vld [vmem:[#allocation2 + $0x24] sm:$0xf]
    %v86 = vld [vmem:[#allocation2 + $0x28] sm:$0xf]
    %v87 = vld [vmem:[#allocation2 + $0x2c] sm:$0xf]
    %v88 = vld [vmem:[#allocation2 + $0x30] sm:$0xf]
    %v89 = vld [vmem:[#allocation2 + $0x34] sm:$0xf]
    %v90 = vld [vmem:[#allocation2 + $0x38] sm:$0xf]
    %v91 = vld [vmem:[#allocation2 + $0x3c] sm:$0xf]
    %v92 = vld [vmem:[%s2] sm:$0x1]
    %v94 = vperm.slane %v92, 0
    %v112 = vunpack.c.l.b16 %v76
    %v113 = vunpack.c.l.b16 %v77
    %v114 = vunpack.c.l.b16 %v78
    %v115 = vunpack.c.l.b16 %v79
    %v116 = vunpack.c.l.b16 %v80
    %v117 = vunpack.c.l.b16 %v81
    %v118 = vunpack.c.l.b16 %v82
    %v119 = vunpack.c.l.b16 %v83
    %v120 = vunpack.c.l.b16 %v84
    %v121 = vunpack.c.l.b16 %v85
    %v122 = vunpack.c.l.b16 %v86
    %v123 = vunpack.c.l.b16 %v87
    %v124 = vunpack.c.l.b16 %v88
    %v125 = vunpack.c.l.b16 %v89
    %v126 = vunpack.c.l.b16 %v90
    %v127 = vunpack.c.l.b16 %v91
    %v128 = vpack.c.b16 %v113, %v112
    %v129 = vpack.c.b16 %v115, %v114
    %v130 = vpack.c.b16 %v117, %v116
    %v131 = vpack.c.b16 %v119, %v118
    %v132 = vpack.c.b16 %v121, %v120
    %v133 = vpack.c.b16 %v123, %v122
    %v134 = vpack.c.b16 %v125, %v124
    %v135 = vpack.c.b16 %v127, %v126
    %144 = vmatpush.bf16.msra.mxu0 %v135
    %145 = vmatpush.bf16.msra.mxu0 %v134
    %146 = vmatpush.bf16.msra.mxu0 %v133
    %147 = vmatpush.bf16.msra.mxu0 %v132
    %148 = vmatpush.bf16.msra.mxu0 %v131
    %149 = vmatpush.bf16.msra.mxu0 %v130
    %150 = vmatpush.bf16.msra.mxu0 %v129
    %151 = vmatpush.bf16.msra.mxu0 %v128
    %152 = vmatmul.bf16.gmra.mxu0 %v75
    %v153 = vpop.f32.mrf.mxu0
    %v154 = vadd.f32 %v94, %v153
    %v155 = vpop.f32.mrf.mxu0
    %v156 = vadd.f32 %v94, %v155
    %157 = vdwg.mxu0
    %vm158 = vcmp.gt.f32.partialorder %v154, 0.0
    %vm159 = vcmp.gt.f32.partialorder %v156, 0.0
    %v160 = vmul.f32 %v154, 0.01
    %v161 = vmul.f32 %v156, 0.01
    %v162 = vsel %vm158, %v154, %v160
    %v163 = vsel %vm159, %v156, %v161
    %v164 = vpack.c.bf16 %v163, %v162
    %v165 = vld [vmem:[#allocation4] sm:$0xf]
    %v166 = vld [vmem:[#allocation4 + $0x4] sm:$0xf]
    %v167 = vld [vmem:[#allocation4 + $0x8] sm:$0xf]
    %v168 = vld [vmem:[#allocation4 + $0xc] sm:$0xf]
    %v169 = vld [vmem:[#allocation4 + $0x10] sm:$0xf]
    %v170 = vld [vmem:[#allocation4 + $0x14] sm:$0xf]
    %v171 = vld [vmem:[#allocation4 + $0x18] sm:$0xf]
    %v172 = vld [vmem:[#allocation4 + $0x1c] sm:$0xf]
    %v173 = vld [vmem:[#allocation4 + $0x20] sm:$0xf]
    %v174 = vld [vmem:[#allocation4 + $0x24] sm:$0xf]
    %v175 = vld [vmem:[#allocation4 + $0x28] sm:$0xf]
    %v176 = vld [vmem:[#allocation4 + $0x2c] sm:$0xf]
    %v177 = vld [vmem:[#allocation4 + $0x30] sm:$0xf]
    %v178 = vld [vmem:[#allocation4 + $0x34] sm:$0xf]
    %v179 = vld [vmem:[#allocation4 + $0x38] sm:$0xf]
    %v180 = vld [vmem:[#allocation4 + $0x3c] sm:$0xf]
    %v181 = vld [vmem:[%s4] sm:$0x1]
    %v183 = vperm.slane %v181, 0
    %v201 = vunpack.c.l.b16 %v165
    %v202 = vunpack.c.l.b16 %v166
    %v203 = vunpack.c.l.b16 %v167
    %v204 = vunpack.c.l.b16 %v168
    %v205 = vunpack.c.l.b16 %v169
    %v206 = vunpack.c.l.b16 %v170
    %v207 = vunpack.c.l.b16 %v171
    %v208 = vunpack.c.l.b16 %v172
    %v209 = vunpack.c.l.b16 %v173
    %v210 = vunpack.c.l.b16 %v174
    %v211 = vunpack.c.l.b16 %v175
    %v212 = vunpack.c.l.b16 %v176
    %v213 = vunpack.c.l.b16 %v177
    %v214 = vunpack.c.l.b16 %v178
    %v215 = vunpack.c.l.b16 %v179
    %v216 = vunpack.c.l.b16 %v180
    %v217 = vpack.c.b16 %v202, %v201
    %v218 = vpack.c.b16 %v204, %v203
    %v219 = vpack.c.b16 %v206, %v205
    %v220 = vpack.c.b16 %v208, %v207
    %v221 = vpack.c.b16 %v210, %v209
    %v222 = vpack.c.b16 %v212, %v211
    %v223 = vpack.c.b16 %v214, %v213
    %v224 = vpack.c.b16 %v216, %v215
    %233 = vmatpush.bf16.msra.mxu0 %v224
    %234 = vmatpush.bf16.msra.mxu0 %v223
    %235 = vmatpush.bf16.msra.mxu0 %v222
    %236 = vmatpush.bf16.msra.mxu0 %v221
    %237 = vmatpush.bf16.msra.mxu0 %v220
    %238 = vmatpush.bf16.msra.mxu0 %v219
    %239 = vmatpush.bf16.msra.mxu0 %v218
    %240 = vmatpush.bf16.msra.mxu0 %v217
    %241 = vmatmul.bf16.gmra.mxu0 %v164
    %v242 = vpop.f32.mrf.mxu0
    %v243 = vadd.f32 %v183, %v242
    %v244 = vpop.f32.mrf.mxu0
    %v245 = vadd.f32 %v183, %v244
    %246 = vdwg.mxu0
    %vm247 = vcmp.gt.f32.partialorder %v243, 0.0
    %vm248 = vcmp.gt.f32.partialorder %v245, 0.0
    %v249 = vmul.f32 %v243, 0.01
    %v250 = vmul.f32 %v245, 0.01
    %v251 = vsel %vm247, %v243, %v249
    %v252 = vsel %vm248, %v245, %v250
    %v253 = vpack.c.bf16 %v252, %v251
    %v254 = vld [vmem:[#allocation6] sm:$0xf]
    %v255 = vld [vmem:[#allocation6 + $0x4] sm:$0xf]
    %v256 = vld [vmem:[#allocation6 + $0x8] sm:$0xf]
    %v257 = vld [vmem:[#allocation6 + $0xc] sm:$0xf]
    %v258 = vld [vmem:[#allocation6 + $0x10] sm:$0xf]
    %v259 = vld [vmem:[#allocation6 + $0x14] sm:$0xf]
    %v260 = vld [vmem:[#allocation6 + $0x18] sm:$0xf]
    %v261 = vld [vmem:[#allocation6 + $0x1c] sm:$0xf]
    %v262 = vld [vmem:[#allocation6 + $0x20] sm:$0xf]
    %v263 = vld [vmem:[#allocation6 + $0x24] sm:$0xf]
    %v264 = vld [vmem:[#allocation6 + $0x28] sm:$0xf]
    %v265 = vld [vmem:[#allocation6 + $0x2c] sm:$0xf]
    %v266 = vld [vmem:[#allocation6 + $0x30] sm:$0xf]
    %v267 = vld [vmem:[#allocation6 + $0x34] sm:$0xf]
    %v268 = vld [vmem:[#allocation6 + $0x38] sm:$0xf]
    %v269 = vld [vmem:[#allocation6 + $0x3c] sm:$0xf]
    %v270 = vld [vmem:[%s6] sm:$0x1]
    %v272 = vperm.slane %v270, 0
    %v290 = vunpack.c.l.b16 %v254
    %v291 = vunpack.c.l.b16 %v255
    %v292 = vunpack.c.l.b16 %v256
    %v293 = vunpack.c.l.b16 %v257
    %v294 = vunpack.c.l.b16 %v258
    %v295 = vunpack.c.l.b16 %v259
    %v296 = vunpack.c.l.b16 %v260
    %v297 = vunpack.c.l.b16 %v261
    %v298 = vunpack.c.l.b16 %v262
    %v299 = vunpack.c.l.b16 %v263
    %v300 = vunpack.c.l.b16 %v264
    %v301 = vunpack.c.l.b16 %v265
    %v302 = vunpack.c.l.b16 %v266
    %v303 = vunpack.c.l.b16 %v267
    %v304 = vunpack.c.l.b16 %v268
    %v305 = vunpack.c.l.b16 %v269
    %v306 = vpack.c.b16 %v291, %v290
    %v307 = vpack.c.b16 %v293, %v292
    %v308 = vpack.c.b16 %v295, %v294
    %v309 = vpack.c.b16 %v297, %v296
    %v310 = vpack.c.b16 %v299, %v298
    %v311 = vpack.c.b16 %v301, %v300
    %v312 = vpack.c.b16 %v303, %v302
    %v313 = vpack.c.b16 %v305, %v304
    %322 = vmatpush.bf16.msra.mxu0 %v313
    %323 = vmatpush.bf16.msra.mxu0 %v312
    %324 = vmatpush.bf16.msra.mxu0 %v311
    %325 = vmatpush.bf16.msra.mxu0 %v310
    %326 = vmatpush.bf16.msra.mxu0 %v309
    %327 = vmatpush.bf16.msra.mxu0 %v308
    %328 = vmatpush.bf16.msra.mxu0 %v307
    %329 = vmatpush.bf16.msra.mxu0 %v306
    %330 = vmatmul.bf16.gmra.mxu0 %v253
    %v331 = vpop.f32.mrf.mxu0
    %v332 = vadd.f32 %v272, %v331
    %v333 = vpop.f32.mrf.mxu0
    %v334 = vadd.f32 %v272, %v333
    %335 = vdwg.mxu0
    %336 = vst [vmem:[%s7] sm:$0xff] %v332
    %337 = vst [vmem:[%s7 + $0x8] sm:$0xff] %v334
    // Predicated region
    $region42: #{_decode_packed.1} parent=1 // pred_check
      _
    $region43: #{_decode_packed.1} parent=1 // pred_check_branch
      %339 = sbr.rel (0) target = $region45
    $region44: #{_decode_packed.1} parent=1 // pred_region
      _
    $region45: #{_decode_packed.1} parent=1 // pred_fallthru
      _
    // Predicated region
    $region46: #{_decode_packed.1} parent=1 // pred_check
      _
    $region47: #{_decode_packed.1} parent=1 // pred_check_branch
      %341 = sbr.rel (0) target = $region49
    $region48: #{_decode_packed.1} parent=1 // pred_region
      _
    $region49: #{_decode_packed.1} parent=1 // pred_fallthru
      _
    %342 = vsyncpa [#allocation3], 1
    %343 = vsyncpa [#allocation5], 1

</llo_original>
